<compile_context>
chip_gen: v7x
topology: tpu7x:2x2x1
jax: 0.10.0
libtpu: 0.0.40
codegen_flags: <defaults>
</compile_context>

<pallas_src>
import functools

import jax
import jax.numpy as jnp
from jax.experimental import pallas as pl
from jax.experimental.pallas import tpu as pltpu

# ---- static dims of the module ----
TEXT_IN = 300        # fasttext dim
TEXT_HID = 168
TEXT_OUT = 80
LINK_DIM = 50
DOM_DIM = 30
HEAD_HID = 80
HEAD_OUT = 18
OUT_PAD = 128        # lane-dense output (only first 18 columns are valid)

MAX_TILE_B = 2048    # v5e-safe (fits 16 MiB scoped VMEM with double-buffered I/O)


def _round_up(x, m):
    return (x + m - 1) // m * m


def _auto_tile_b(B):
    """Multiple of 16 (bf16 sublane packing), capped at MAX_TILE_B, >=8 grid steps for big B."""
    n_steps = pl.cdiv(B, MAX_TILE_B)
    if B >= 2 * MAX_TILE_B:
        n_steps = max(n_steps, 8)          # megacore split + deep pipeline on v7x
    tb = _round_up(pl.cdiv(B, n_steps), 16)
    return max(16, min(tb, _round_up(B, 16)))


def _product_nn_kernel(text_ref, link_ref, dom_ref,
                       wt1_ref, bt1_ref, wfold_ref, w1l_ref, w1d_ref, b1_ref,
                       w2_ref, b2_ref, o_ref):
    # ---- text_emb_net layer 1: relu(text @ Wt1 + bt1) ----
    x = text_ref[...].astype(jnp.bfloat16)                        # (TB, 300)
    h = jnp.dot(x, wt1_ref[...], preferred_element_type=jnp.float32)
    h = jnp.maximum(h + bt1_ref[...], 0.0)                        # (TB, 168) f32

    # ---- head linear1 with folded text layer 2:
    #   relu(h) @ (Wt2 @ W1_text) + link @ W1_link + dom @ W1_dom + (b1 + bt2 @ W1_text)
    pre = jnp.dot(h.astype(jnp.bfloat16), wfold_ref[...],
                  preferred_element_type=jnp.float32)
    pre = pre + jnp.dot(link_ref[...].astype(jnp.bfloat16), w1l_ref[...],
                        preferred_element_type=jnp.float32)
    pre = pre + jnp.dot(dom_ref[...].astype(jnp.bfloat16), w1d_ref[...],
                        preferred_element_type=jnp.float32)
    pre = jnp.maximum(pre + b1_ref[...], 0.0)                     # (TB, 80) f32

    # ---- head linear2 (output lane-padded to 128, stored bf16) ----
    out = jnp.dot(pre.astype(jnp.bfloat16), w2_ref[...],
                  preferred_element_type=jnp.float32)
    o_ref[...] = (out + b2_ref[...]).astype(o_ref.dtype)          # (TB, 128) bf16


@functools.partial(jax.jit, static_argnames=("tile_b",))
def product_nn_forward(text_feats, link_ids, domain_ids, params, *, tile_b=None):
    """Fused Product_NN forward.  Returns (B, 18) float32."""
    B = text_feats.shape[0]
    if tile_b is None:
        tile_b = _auto_tile_b(B)
    grid = (pl.cdiv(B, tile_b),)

    # Embedding lookups (nn.Embedding) done in XLA; rows read by the kernel unpadded, f32.
    text = text_feats.astype(jnp.float32)             # (B, 300)
    link_e = params["link_table"][link_ids].astype(jnp.float32)     # (B, 50)
    dom_e = params["domain_table"][domain_ids].astype(jnp.float32)  # (B, 30)  (padding row is zero)

    # ---- weight prep (fold done in f32, matmul operands cast to bf16, biases stay f32) ----
    wt1 = params["wt1"].astype(jnp.bfloat16)                         # (300, 168)
    bt1 = params["bt1"].reshape(1, -1).astype(jnp.float32)           # (1, 168)

    w1 = params["w1"].astype(jnp.float32)   # (160, 80) rows ordered [link(50), text(80), domain(30)]
    w1_link = w1[:LINK_DIM]                                          # (50, 80)
    w1_text = w1[LINK_DIM:LINK_DIM + TEXT_OUT]                       # (80, 80)
    w1_dom = w1[LINK_DIM + TEXT_OUT:]                                # (30, 80)

    w_fold = (params["wt2"].astype(jnp.float32) @ w1_text).astype(jnp.bfloat16)      # (168, 80)
    b1_fold = (params["b1"].astype(jnp.float32)
               + params["bt2"].astype(jnp.float32) @ w1_text).reshape(1, -1)         # (1, 80) f32
    w1_link_bf = w1_link.astype(jnp.bfloat16)
    w1_dom_bf = w1_dom.astype(jnp.bfloat16)

    w2 = jnp.zeros((HEAD_HID, OUT_PAD), jnp.bfloat16)
    w2 = w2.at[:, :HEAD_OUT].set(params["w2"].astype(jnp.bfloat16))                  # (80, 128)
    b2 = jnp.zeros((1, OUT_PAD), jnp.float32)
    b2 = b2.at[:, :HEAD_OUT].set(params["b2"].astype(jnp.float32))                   # (1, 128)

    flops = 2 * B * (TEXT_IN * TEXT_HID + TEXT_HID * HEAD_HID
                     + LINK_DIM * HEAD_HID + DOM_DIM * HEAD_HID
                     + HEAD_HID * OUT_PAD)
    bytes_accessed = (B * (TEXT_IN + LINK_DIM + DOM_DIM) * 4      # f32 activations in
                      + B * OUT_PAD * 2                            # bf16 out
                      + (wt1.size + w_fold.size + w1_link_bf.size
                         + w1_dom_bf.size + w2.size) * 2
                      + (bt1.size + b1_fold.size + b2.size) * 4)

    out = pl.pallas_call(
        _product_nn_kernel,
        out_shape=jax.ShapeDtypeStruct((B, OUT_PAD), jnp.bfloat16),
        grid=grid,
        in_specs=[
            pl.BlockSpec((tile_b, TEXT_IN), lambda i: (i, 0)),    # text   (batch-tiled, f32)
            pl.BlockSpec((tile_b, LINK_DIM), lambda i: (i, 0)),   # link_e (batch-tiled, f32)
            pl.BlockSpec((tile_b, DOM_DIM), lambda i: (i, 0)),    # dom_e  (batch-tiled, f32)
            pl.BlockSpec((TEXT_IN, TEXT_HID), lambda i: (0, 0)),  # wt1      (resident)
            pl.BlockSpec((1, TEXT_HID), lambda i: (0, 0)),        # bt1
            pl.BlockSpec((TEXT_HID, HEAD_HID), lambda i: (0, 0)), # w_fold = wt2 @ w1_text
            pl.BlockSpec((LINK_DIM, HEAD_HID), lambda i: (0, 0)), # w1_link
            pl.BlockSpec((DOM_DIM, HEAD_HID), lambda i: (0, 0)),  # w1_dom
            pl.BlockSpec((1, HEAD_HID), lambda i: (0, 0)),        # b1_fold
            pl.BlockSpec((HEAD_HID, OUT_PAD), lambda i: (0, 0)),  # w2 (lane-padded)
            pl.BlockSpec((1, OUT_PAD), lambda i: (0, 0)),         # b2 (lane-padded)
        ],
        out_specs=pl.BlockSpec((tile_b, OUT_PAD), lambda i: (i, 0)),
        compiler_params=pltpu.CompilerParams(
            dimension_semantics=("parallel",)),
        cost_estimate=pl.CostEstimate(flops=flops, transcendentals=0,
                                      bytes_accessed=bytes_accessed),
    )(text, link_e, dom_e, wt1, bt1, w_fold, w1_link_bf, w1_dom_bf, b1_fold, w2, b2)

    return out[:, :HEAD_OUT].astype(jnp.float32)


def init_params(key, n_link, n_domain):
    """Deterministic init matching nn.Linear / nn.Embedding conventions."""
    ks = jax.random.split(key, 10)

    def unif(k, shape, fan_in):
        b = 1.0 / jnp.sqrt(float(fan_in))
        return jax.random.uniform(k, shape, jnp.float32, -b, b)

    link_table = jax.random.normal(ks[0], (n_link + 1, LINK_DIM), jnp.float32)
    domain_table = jax.random.normal(ks[1], (n_domain + 2, DOM_DIM), jnp.float32)
    domain_table = domain_table.at[n_domain + 1].set(0.0)   # padding_idx row

    return dict(
        link_table=link_table,
        domain_table=domain_table,
        wt1=unif(ks[2], (TEXT_IN, TEXT_HID), TEXT_IN),
        bt1=unif(ks[3], (TEXT_HID,), TEXT_IN),
        wt2=unif(ks[4], (TEXT_HID, TEXT_OUT), TEXT_HID),
        bt2=unif(ks[5], (TEXT_OUT,), TEXT_HID),
        w1=unif(ks[6], (LINK_DIM + TEXT_OUT + DOM_DIM, HEAD_HID), LINK_DIM + TEXT_OUT + DOM_DIM),
        b1=unif(ks[7], (HEAD_HID,), LINK_DIM + TEXT_OUT + DOM_DIM),
        w2=unif(ks[8], (HEAD_HID, HEAD_OUT), HEAD_HID),
        b2=unif(ks[9], (HEAD_OUT,), HEAD_HID),
    )


def reference_forward(text_feats, link_ids, domain_ids, p):
    """Pure-JAX f32 reference mirroring the PyTorch module."""
    t = jnp.maximum(text_feats @ p["wt1"] + p["bt1"], 0.0) @ p["wt2"] + p["bt2"]
    link_e = p["link_table"][link_ids]
    dom_e = p["domain_table"][domain_ids]
    x = jnp.concatenate([link_e, t, dom_e], axis=1)          # (B, 160)
    return jnp.maximum(x @ p["w1"] + p["b1"], 0.0) @ p["w2"] + p["b2"]


if __name__ == "__main__":
    key = jax.random.PRNGKey(0)
    k_text, k_link, k_dom, k_par = jax.random.split(key, 4)

    batch = 16
    n_link, n_domain = 40, 12

    text_feats = jax.random.normal(k_text, (batch, TEXT_IN), jnp.float32)
    link_ids = jax.random.randint(k_link, (batch,), 0, n_link + 1)
    domain_ids = jax.random.randint(k_dom, (batch,), 0, n_domain + 2)  # may hit padding_idx
    params = init_params(k_par, n_link, n_domain)

    out = product_nn_forward(text_feats, link_ids, domain_ids, params)
    out = jax.block_until_ready(out)

    ref = reference_forward(text_feats, link_ids, domain_ids, params)
    assert out.shape == (batch, HEAD_OUT)
    assert jnp.allclose(out, ref, atol=5e-2, rtol=5e-2), float(jnp.max(jnp.abs(out - ref)))

    print("KERNEL_OK")
</pallas_src>

<mosaic_0001>
module attributes {stable_mosaic.version = 11 : i64} {
  func.func @_product_nn_kernel(%arg0: i32, %arg1: memref<16x300xf32, #tpu.memory_space<vmem>>, %arg2: memref<16x50xf32, #tpu.memory_space<vmem>>, %arg3: memref<16x30xf32, #tpu.memory_space<vmem>>, %arg4: memref<300x168xbf16, #tpu.memory_space<vmem>>, %arg5: memref<1x168xf32, #tpu.memory_space<vmem>>, %arg6: memref<168x80xbf16, #tpu.memory_space<vmem>>, %arg7: memref<50x80xbf16, #tpu.memory_space<vmem>>, %arg8: memref<30x80xbf16, #tpu.memory_space<vmem>>, %arg9: memref<1x80xf32, #tpu.memory_space<vmem>>, %arg10: memref<80x128xbf16, #tpu.memory_space<vmem>>, %arg11: memref<1x128xf32, #tpu.memory_space<vmem>>, %arg12: memref<16x128xbf16, #tpu.memory_space<vmem>>) attributes {dimension_semantics = [#tpu.dimension_semantics<parallel>], iteration_bounds = array<i64: 1>, scalar_prefetch = 0 : i64, scratch_operands = 0 : i64, tpu.core_type = #tpu.core_type<tc>, window_params = [{transform_indices = @transform_0, window_bounds = array<i64: 16, 300>}, {transform_indices = @transform_1, window_bounds = array<i64: 16, 50>}, {transform_indices = @transform_2, window_bounds = array<i64: 16, 30>}, {pipeline_mode = #tpu.pipeline_mode<synchronous>, transform_indices = @transform_3, window_bounds = array<i64: 300, 168>}, {pipeline_mode = #tpu.pipeline_mode<synchronous>, transform_indices = @transform_4, window_bounds = array<i64: 1, 168>}, {pipeline_mode = #tpu.pipeline_mode<synchronous>, transform_indices = @transform_5, window_bounds = array<i64: 168, 80>}, {pipeline_mode = #tpu.pipeline_mode<synchronous>, transform_indices = @transform_6, window_bounds = array<i64: 50, 80>}, {pipeline_mode = #tpu.pipeline_mode<synchronous>, transform_indices = @transform_7, window_bounds = array<i64: 30, 80>}, {pipeline_mode = #tpu.pipeline_mode<synchronous>, transform_indices = @transform_8, window_bounds = array<i64: 1, 80>}, {pipeline_mode = #tpu.pipeline_mode<synchronous>, transform_indices = @transform_9, window_bounds = array<i64: 80, 128>}, {pipeline_mode = #tpu.pipeline_mode<synchronous>, transform_indices = @transform_10, window_bounds = array<i64: 1, 128>}, {transform_indices = @transform_11, window_bounds = array<i64: 16, 128>}]} {
    %c0 = arith.constant 0 : index
    %c0_0 = arith.constant 0 : index
    %0 = vector.load %arg1[%c0, %c0_0] : memref<16x300xf32, #tpu.memory_space<vmem>>, vector<16x300xf32>
    %1 = arith.truncf %0 : vector<16x300xf32> to vector<16x300xbf16>
    %c0_1 = arith.constant 0 : index
    %c0_2 = arith.constant 0 : index
    %2 = vector.load %arg4[%c0_1, %c0_2] : memref<300x168xbf16, #tpu.memory_space<vmem>>, vector<300x168xbf16>
    %cst = arith.constant dense<0.000000e+00> : vector<16x168xf32>
    %3 = tpu.matmul %1, %2, %cst {dimension_numbers = #tpu.dot_dimension_numbers<[1], [0], [0], [1], [0, 0, 1, 1], [], []>} : vector<16x300xbf16>, vector<300x168xbf16>, vector<16x168xf32> -> vector<16x168xf32>
    %c0_3 = arith.constant 0 : index
    %c0_4 = arith.constant 0 : index
    %4 = vector.load %arg5[%c0_3, %c0_4] : memref<1x168xf32, #tpu.memory_space<vmem>>, vector<1x168xf32>
    %5 = vector.broadcast %4 : vector<1x168xf32> to vector<16x168xf32>
    %6 = arith.addf %3, %5 : vector<16x168xf32>
    %cst_5 = arith.constant 0.000000e+00 : f32
    %7 = vector.broadcast %cst_5 : f32 to vector<16x168xf32>
    %8 = arith.maximumf %6, %7 : vector<16x168xf32>
    %9 = arith.truncf %8 : vector<16x168xf32> to vector<16x168xbf16>
    %c0_6 = arith.constant 0 : index
    %c0_7 = arith.constant 0 : index
    %10 = vector.load %arg6[%c0_6, %c0_7] : memref<168x80xbf16, #tpu.memory_space<vmem>>, vector<168x80xbf16>
    %cst_8 = arith.constant dense<0.000000e+00> : vector<16x80xf32>
    %11 = tpu.matmul %9, %10, %cst_8 {dimension_numbers = #tpu.dot_dimension_numbers<[1], [0], [0], [1], [0, 0, 1, 1], [], []>} : vector<16x168xbf16>, vector<168x80xbf16>, vector<16x80xf32> -> vector<16x80xf32>
    %c0_9 = arith.constant 0 : index
    %c0_10 = arith.constant 0 : index
    %12 = vector.load %arg2[%c0_9, %c0_10] : memref<16x50xf32, #tpu.memory_space<vmem>>, vector<16x50xf32>
    %13 = arith.truncf %12 : vector<16x50xf32> to vector<16x50xbf16>
    %c0_11 = arith.constant 0 : index
    %c0_12 = arith.constant 0 : index
    %14 = vector.load %arg7[%c0_11, %c0_12] : memref<50x80xbf16, #tpu.memory_space<vmem>>, vector<50x80xbf16>
    %cst_13 = arith.constant dense<0.000000e+00> : vector<16x80xf32>
    %15 = tpu.matmul %13, %14, %cst_13 {dimension_numbers = #tpu.dot_dimension_numbers<[1], [0], [0], [1], [0, 0, 1, 1], [], []>} : vector<16x50xbf16>, vector<50x80xbf16>, vector<16x80xf32> -> vector<16x80xf32>
    %16 = arith.addf %11, %15 : vector<16x80xf32>
    %c0_14 = arith.constant 0 : index
    %c0_15 = arith.constant 0 : index
    %17 = vector.load %arg3[%c0_14, %c0_15] : memref<16x30xf32, #tpu.memory_space<vmem>>, vector<16x30xf32>
    %18 = arith.truncf %17 : vector<16x30xf32> to vector<16x30xbf16>
    %c0_16 = arith.constant 0 : index
    %c0_17 = arith.constant 0 : index
    %19 = vector.load %arg8[%c0_16, %c0_17] : memref<30x80xbf16, #tpu.memory_space<vmem>>, vector<30x80xbf16>
    %cst_18 = arith.constant dense<0.000000e+00> : vector<16x80xf32>
    %20 = tpu.matmul %18, %19, %cst_18 {dimension_numbers = #tpu.dot_dimension_numbers<[1], [0], [0], [1], [0, 0, 1, 1], [], []>} : vector<16x30xbf16>, vector<30x80xbf16>, vector<16x80xf32> -> vector<16x80xf32>
    %21 = arith.addf %16, %20 : vector<16x80xf32>
    %c0_19 = arith.constant 0 : index
    %c0_20 = arith.constant 0 : index
    %22 = vector.load %arg9[%c0_19, %c0_20] : memref<1x80xf32, #tpu.memory_space<vmem>>, vector<1x80xf32>
    %23 = vector.broadcast %22 : vector<1x80xf32> to vector<16x80xf32>
    %24 = arith.addf %21, %23 : vector<16x80xf32>
    %cst_21 = arith.constant 0.000000e+00 : f32
    %25 = vector.broadcast %cst_21 : f32 to vector<16x80xf32>
    %26 = arith.maximumf %24, %25 : vector<16x80xf32>
    %27 = arith.truncf %26 : vector<16x80xf32> to vector<16x80xbf16>
    %c0_22 = arith.constant 0 : index
    %c0_23 = arith.constant 0 : index
    %28 = vector.load %arg10[%c0_22, %c0_23] : memref<80x128xbf16, #tpu.memory_space<vmem>>, vector<80x128xbf16>
    %cst_24 = arith.constant dense<0.000000e+00> : vector<16x128xf32>
    %29 = tpu.matmul %27, %28, %cst_24 {dimension_numbers = #tpu.dot_dimension_numbers<[1], [0], [0], [1], [0, 0, 1, 1], [], []>} : vector<16x80xbf16>, vector<80x128xbf16>, vector<16x128xf32> -> vector<16x128xf32>
    %c0_25 = arith.constant 0 : index
    %c0_26 = arith.constant 0 : index
    %30 = vector.load %arg11[%c0_25, %c0_26] : memref<1x128xf32, #tpu.memory_space<vmem>>, vector<1x128xf32>
    %31 = vector.broadcast %30 : vector<1x128xf32> to vector<16x128xf32>
    %32 = arith.addf %29, %31 : vector<16x128xf32>
    %33 = arith.truncf %32 : vector<16x128xf32> to vector<16x128xbf16>
    %c0_27 = arith.constant 0 : index
    %c0_28 = arith.constant 0 : index
    %34 = vector.load %arg12[%c0_27, %c0_28] : memref<16x128xbf16, #tpu.memory_space<vmem>>, vector<16x128xbf16>
    tpu.vector_store %arg12[%c0_27, %c0_28], %33 {strides = array<i32>} : memref<16x128xbf16, #tpu.memory_space<vmem>>, vector<16x128xbf16>,
    return
  }
  func.func @transform_0(%arg0: i32) -> (i32, i32) {
    %c0_i32 = arith.constant 0 : i32
    %c0_i32_0 = arith.constant 0 : i32
    return %arg0, %c0_i32 : i32, i32
  }
  func.func @transform_1(%arg0: i32) -> (i32, i32) {
    %c0_i32 = arith.constant 0 : i32
    %c0_i32_0 = arith.constant 0 : i32
    return %arg0, %c0_i32 : i32, i32
  }
  func.func @transform_2(%arg0: i32) -> (i32, i32) {
    %c0_i32 = arith.constant 0 : i32
    %c0_i32_0 = arith.constant 0 : i32
    return %arg0, %c0_i32 : i32, i32
  }
  func.func @transform_3(%arg0: i32) -> (i32, i32) {
    %c0_i32 = arith.constant 0 : i32
    %c0_i32_0 = arith.constant 0 : i32
    %c0_i32_1 = arith.constant 0 : i32
    return %c0_i32, %c0_i32_0 : i32, i32
  }
  func.func @transform_4(%arg0: i32) -> (i32, i32) {
    %c0_i32 = arith.constant 0 : i32
    %c0_i32_0 = arith.constant 0 : i32
    %c0_i32_1 = arith.constant 0 : i32
    return %c0_i32, %c0_i32_0 : i32, i32
  }
  func.func @transform_5(%arg0: i32) -> (i32, i32) {
    %c0_i32 = arith.constant 0 : i32
    %c0_i32_0 = arith.constant 0 : i32
    %c0_i32_1 = arith.constant 0 : i32
    return %c0_i32, %c0_i32_0 : i32, i32
  }
  func.func @transform_6(%arg0: i32) -> (i32, i32) {
    %c0_i32 = arith.constant 0 : i32
    %c0_i32_0 = arith.constant 0 : i32
    %c0_i32_1 = arith.constant 0 : i32
    return %c0_i32, %c0_i32_0 : i32, i32
  }
  func.func @transform_7(%arg0: i32) -> (i32, i32) {
    %c0_i32 = arith.constant 0 : i32
    %c0_i32_0 = arith.constant 0 : i32
    %c0_i32_1 = arith.constant 0 : i32
    return %c0_i32, %c0_i32_0 : i32, i32
  }
  func.func @transform_8(%arg0: i32) -> (i32, i32) {
    %c0_i32 = arith.constant 0 : i32
    %c0_i32_0 = arith.constant 0 : i32
    %c0_i32_1 = arith.constant 0 : i32
    return %c0_i32, %c0_i32_0 : i32, i32
  }
  func.func @transform_9(%arg0: i32) -> (i32, i32) {
    %c0_i32 = arith.constant 0 : i32
    %c0_i32_0 = arith.constant 0 : i32
    %c0_i32_1 = arith.constant 0 : i32
    return %c0_i32, %c0_i32_0 : i32, i32
  }
  func.func @transform_10(%arg0: i32) -> (i32, i32) {
    %c0_i32 = arith.constant 0 : i32
    %c0_i32_0 = arith.constant 0 : i32
    %c0_i32_1 = arith.constant 0 : i32
    return %c0_i32, %c0_i32_0 : i32, i32
  }
  func.func @transform_11(%arg0: i32) -> (i32, i32) {
    %c0_i32 = arith.constant 0 : i32
    %c0_i32_0 = arith.constant 0 : i32
    return %arg0, %c0_i32 : i32, i32
  }
}

</mosaic_0001>

<llo_original>
// kernel: product_nn_forward.1
$region0: #{product_nn_forward.1}
  #allocation0 [shape = 'u32[]', space=smem, size = 0x4, offset = 0x4, fixed_abs, tag = 'smem constant byte address 0x4 - core index']
  #allocation1 [shape = 'u32[144,128]{1,0:T(1,128)}', space=vmem, size = 0x12000, scoped, tag = 'internal scratch']
  %s0 = inlined_call_operand.vmem [shape: f32[16,300], index: 0, kind: input, shape index: {}]
  %s1 = inlined_call_operand.vmem [shape: f32[16,50], index: 1, kind: input, shape index: {}]
  %s2 = inlined_call_operand.vmem [shape: f32[16,30], index: 2, kind: input, shape index: {}]
  %s3 = inlined_call_operand.vmem [shape: bf16[300,168], index: 3, kind: input, shape index: {}]
  %s4 = inlined_call_operand.vmem [shape: f32[1,168], index: 4, kind: input, shape index: {}]
  %s5 = inlined_call_operand.vmem [shape: bf16[168,80], index: 5, kind: input, shape index: {}]
  %s6 = inlined_call_operand.vmem [shape: bf16[50,80], index: 6, kind: input, shape index: {}]
  %s7 = inlined_call_operand.vmem [shape: bf16[30,80], index: 7, kind: input, shape index: {}]
  %s8 = inlined_call_operand.vmem [shape: f32[1,80], index: 8, kind: input, shape index: {}]
  %s9 = inlined_call_operand.vmem [shape: bf16[80,128], index: 9, kind: input, shape index: {}]
  %s10 = inlined_call_operand.vmem [shape: f32[1,128], index: 10, kind: input, shape index: {}]
  %s11 = inlined_call_operand.vmem [shape: bf16[16,128], index: 11, kind: output, shape index: {}]
  %s12 = sld [smem:[#allocation0]]
  $region54: #{product_nn_forward.1} parent=0
    _
  %s14 = ssub.s32 1, %s12
  %s15 = scalar_select 0, %s14, %s12
  // Predicated region
  $region2: #{product_nn_forward.1} parent=0 // pred_check
    _
  $region3: #{product_nn_forward.1} parent=0 // pred_check_branch
    %17 = sbr.rel (0) target = $region5
  $region4: #{product_nn_forward.1} parent=0 // pred_region
    _
  $region5: #{product_nn_forward.1} parent=0 // pred_fallthru
    _
  // Predicated region
  $region6: #{product_nn_forward.1} parent=0 // pred_check
    _
  $region7: #{product_nn_forward.1} parent=0 // pred_check_branch
    %19 = sbr.rel (0) target = $region9
  $region8: #{product_nn_forward.1} parent=0 // pred_region
    _
  $region9: #{product_nn_forward.1} parent=0 // pred_fallthru
    _
  // Predicated region
  $region10: #{product_nn_forward.1} parent=0 // pred_check
    _
  $region11: #{product_nn_forward.1} parent=0 // pred_check_branch
    %21 = sbr.rel (0) target = $region13
  $region12: #{product_nn_forward.1} parent=0 // pred_region
    _
  $region13: #{product_nn_forward.1} parent=0 // pred_fallthru
    _
  // Predicated region
  $region14: #{product_nn_forward.1} parent=0 // pred_check
    _
  $region15: #{product_nn_forward.1} parent=0 // pred_check_branch
    %23 = sbr.rel (0) target = $region17
  $region16: #{product_nn_forward.1} parent=0 // pred_region
    _
  $region17: #{product_nn_forward.1} parent=0 // pred_fallthru
    _
  // Predicated region
  $region18: #{product_nn_forward.1} parent=0 // pred_check
    _
  $region19: #{product_nn_forward.1} parent=0 // pred_check_branch
    %25 = sbr.rel (0) target = $region21
  $region20: #{product_nn_forward.1} parent=0 // pred_region
    _
  $region21: #{product_nn_forward.1} parent=0 // pred_fallthru
    _
  // Predicated region
  $region22: #{product_nn_forward.1} parent=0 // pred_check
    _
  $region23: #{product_nn_forward.1} parent=0 // pred_check_branch
    %27 = sbr.rel (0) target = $region25
  $region24: #{product_nn_forward.1} parent=0 // pred_region
    _
  $region25: #{product_nn_forward.1} parent=0 // pred_fallthru
    _
  // Predicated region
  $region26: #{product_nn_forward.1} parent=0 // pred_check
    _
  $region27: #{product_nn_forward.1} parent=0 // pred_check_branch
    %29 = sbr.rel (0) target = $region29
  $region28: #{product_nn_forward.1} parent=0 // pred_region
    _
  $region29: #{product_nn_forward.1} parent=0 // pred_fallthru
    _
  // Predicated region
  $region30: #{product_nn_forward.1} parent=0 // pred_check
    _
  $region31: #{product_nn_forward.1} parent=0 // pred_check_branch
    %31 = sbr.rel (0) target = $region33
  $region32: #{product_nn_forward.1} parent=0 // pred_region
    _
  $region33: #{product_nn_forward.1} parent=0 // pred_fallthru
    _
  // Predicated region
  $region34: #{product_nn_forward.1} parent=0 // pred_check
    _
  $region35: #{product_nn_forward.1} parent=0 // pred_check_branch
    %33 = sbr.rel (0) target = $region37
  $region36: #{product_nn_forward.1} parent=0 // pred_region
    _
  $region37: #{product_nn_forward.1} parent=0 // pred_fallthru
    _
  // Predicated region
  $region38: #{product_nn_forward.1} parent=0 // pred_check
    _
  $region39: #{product_nn_forward.1} parent=0 // pred_check_branch
    %35 = sbr.rel (0) target = $region41
  $region40: #{product_nn_forward.1} parent=0 // pred_region
    _
  $region41: #{product_nn_forward.1} parent=0 // pred_fallthru
    _
  // Predicated region
  $region42: #{product_nn_forward.1} parent=0 // pred_check
    _
  $region43: #{product_nn_forward.1} parent=0 // pred_check_branch
    %37 = sbr.rel (0) target = $region45
  $region44: #{product_nn_forward.1} parent=0 // pred_region
    _
  $region45: #{product_nn_forward.1} parent=0 // pred_fallthru
    _
  %v39 = vld [vmem:[%s0] sm:$0xff]
  %v40 = vld [vmem:[%s0 + $0x8] sm:$0xff]
  %v41 = vld [vmem:[%s0 + $0x10] sm:$0xff]
  %v42 = vld [vmem:[%s0 + $0x18] sm:$0xff]
  %v43 = vld [vmem:[%s0 + $0x20] sm:$0xff]
  %v44 = vld [vmem:[%s0 + $0x28] sm:$0xff]
  %v45 = vpack.c.bf16 %v42, %v39
  %v46 = vpack.c.bf16 %v43, %v40
  %v47 = vpack.c.bf16 %v44, %v41
  %v48 = vld [vmem:[%s3] sm:$0xff]
  %v49 = vld [vmem:[%s3 + $0x8] sm:$0xff]
  %v50 = vld [vmem:[%s3 + $0x10] sm:$0xff]
  %v51 = vld [vmem:[%s3 + $0x18] sm:$0xff]
  %v52 = vld [vmem:[%s3 + $0x20] sm:$0xff]
  %v53 = vld [vmem:[%s3 + $0x28] sm:$0xff]
  %v54 = vld [vmem:[%s3 + $0x30] sm:$0xff]
  %v55 = vld [vmem:[%s3 + $0x38] sm:$0xff]
  %v56 = vld [vmem:[%s3 + $0x40] sm:$0xff]
  %v57 = vld [vmem:[%s3 + $0x48] sm:$0xff]
  %v58 = vld [vmem:[%s3 + $0x50] sm:$0xff]
  %v59 = vld [vmem:[%s3 + $0x58] sm:$0xff]
  %v60 = vld [vmem:[%s3 + $0x60] sm:$0xff]
  %v61 = vld [vmem:[%s3 + $0x68] sm:$0xff]
  %v62 = vld [vmem:[%s3 + $0x70] sm:$0xff]
  %v63 = vld [vmem:[%s3 + $0x78] sm:$0xff]
  %v64 = vld [vmem:[%s3 + $0x80] sm:$0xff]
  %v65 = vld [vmem:[%s3 + $0x88] sm:$0xff]
  %v66 = vld [vmem:[%s3 + $0x90] sm:$0xff]
  %v67 = vld [vmem:[%s3 + $0x98] sm:$0xff]
  %v68 = vld [vmem:[%s3 + $0xa0] sm:$0xff]
  %v69 = vld [vmem:[%s3 + $0xa8] sm:$0xff]
  %v70 = vld [vmem:[%s3 + $0xb0] sm:$0xff]
  %v71 = vld [vmem:[%s3 + $0xb8] sm:$0xff]
  %v72 = vld [vmem:[%s3 + $0xc0] sm:$0xff]
  %v73 = vld [vmem:[%s3 + $0xc8] sm:$0xff]
  %v74 = vld [vmem:[%s3 + $0xd0] sm:$0xff]
  %v75 = vld [vmem:[%s3 + $0xd8] sm:$0xff]
  %v76 = vld [vmem:[%s3 + $0xe0] sm:$0xff]
  %v77 = vld [vmem:[%s3 + $0xe8] sm:$0xff]
  %v78 = vld [vmem:[%s3 + $0xf0] sm:$0xff]
  %v79 = vld [vmem:[%s3 + $0xf8] sm:$0xff]
  %v80 = vld [vmem:[%s3 + $0x100] sm:$0xff]
  %v81 = vld [vmem:[%s3 + $0x108] sm:$0xff]
  %v82 = vld [vmem:[%s3 + $0x110] sm:$0xff]
  %v83 = vld [vmem:[%s3 + $0x118] sm:$0xff]
  %v84 = vld [vmem:[%s3 + $0x120] sm:$0xff]
  %v85 = vld [vmem:[%s3 + $0x128] sm:$0x33]
  %v86 = vld [vmem:[%s4] sm:$0x3]
  %v88 = vlaneseq
  %v89 = vshrl.u32 %v88, 7
  %v90 = vsub.s32 0, %v89
  %v91 = vrot.slane %v86, %v90
  %v92 = vlaneseq
  %v93 = vshrl.u32 %v92, 7
  %v94 = vsub.s32 1, %v93
  %v95 = vrot.slane %v86, %v94
  %v136 = vunpack.c.l.b16 %v48
  %v137 = vunpack.c.h.b16 %v48
  %v138 = vunpack.c.l.b16 %v49
  %v139 = vunpack.c.h.b16 %v49
  %v140 = vunpack.c.l.b16 %v50
  %v141 = vunpack.c.h.b16 %v50
  %v142 = vunpack.c.l.b16 %v51
  %v143 = vunpack.c.h.b16 %v51
  %v144 = vunpack.c.l.b16 %v52
  %v145 = vunpack.c.h.b16 %v52
  %v146 = vunpack.c.l.b16 %v53
  %v147 = vunpack.c.h.b16 %v53
  %v148 = vunpack.c.l.b16 %v54
  %v149 = vunpack.c.h.b16 %v54
  %v150 = vunpack.c.l.b16 %v55
  %v151 = vunpack.c.h.b16 %v55
  %v152 = vunpack.c.l.b16 %v56
  %v153 = vunpack.c.h.b16 %v56
  %v154 = vunpack.c.l.b16 %v57
  %v155 = vunpack.c.h.b16 %v57
  %v156 = vunpack.c.l.b16 %v58
  %v157 = vunpack.c.h.b16 %v58
  %v158 = vunpack.c.l.b16 %v59
  %v159 = vunpack.c.h.b16 %v59
  %v160 = vunpack.c.l.b16 %v60
  %v161 = vunpack.c.h.b16 %v60
  %v162 = vunpack.c.l.b16 %v61
  %v163 = vunpack.c.h.b16 %v61
  %v164 = vunpack.c.l.b16 %v62
  %v165 = vunpack.c.h.b16 %v62
  %v166 = vunpack.c.l.b16 %v63
  %v167 = vunpack.c.h.b16 %v63
  %v168 = vunpack.c.l.b16 %v64
  %v169 = vunpack.c.h.b16 %v64
  %v170 = vunpack.c.l.b16 %v65
  %v171 = vunpack.c.h.b16 %v65
  %v172 = vunpack.c.l.b16 %v66
  %v173 = vunpack.c.h.b16 %v66
  %v174 = vunpack.c.l.b16 %v67
  %v175 = vunpack.c.h.b16 %v67
  %v176 = vunpack.c.l.b16 %v68
  %v177 = vunpack.c.h.b16 %v68
  %v178 = vunpack.c.l.b16 %v69
  %v179 = vunpack.c.h.b16 %v69
  %v180 = vunpack.c.l.b16 %v70
  %v181 = vunpack.c.h.b16 %v70
  %v182 = vunpack.c.l.b16 %v71
  %v183 = vunpack.c.h.b16 %v71
  %v184 = vunpack.c.l.b16 %v72
  %v185 = vunpack.c.h.b16 %v72
  %v186 = vunpack.c.l.b16 %v73
  %v187 = vunpack.c.h.b16 %v73
  %v188 = vunpack.c.l.b16 %v74
  %v189 = vunpack.c.h.b16 %v74
  %v190 = vunpack.c.l.b16 %v75
  %v191 = vunpack.c.h.b16 %v75
  %v192 = vunpack.c.l.b16 %v76
  %v193 = vunpack.c.h.b16 %v76
  %v194 = vunpack.c.l.b16 %v77
  %v195 = vunpack.c.h.b16 %v77
  %v196 = vunpack.c.l.b16 %v78
  %v197 = vunpack.c.h.b16 %v78
  %v198 = vunpack.c.l.b16 %v79
  %v199 = vunpack.c.h.b16 %v79
  %v200 = vunpack.c.l.b16 %v80
  %v201 = vunpack.c.h.b16 %v80
  %v202 = vunpack.c.l.b16 %v81
  %v203 = vunpack.c.h.b16 %v81
  %v204 = vunpack.c.l.b16 %v82
  %v205 = vunpack.c.h.b16 %v82
  %v206 = vunpack.c.l.b16 %v83
  %v207 = vunpack.c.h.b16 %v83
  %v208 = vunpack.c.l.b16 %v84
  %v209 = vunpack.c.h.b16 %v84
  %v210 = vunpack.c.l.b16 %v85
  %v211 = vunpack.c.h.b16 %v85
  %v212 = vpack.c.b16 %v138, %v136
  %v213 = vpack.c.b16 %v139, %v137
  %v214 = vpack.c.b16 %v142, %v140
  %v215 = vpack.c.b16 %v143, %v141
  %v216 = vpack.c.b16 %v146, %v144
  %v217 = vpack.c.b16 %v147, %v145
  %v218 = vpack.c.b16 %v150, %v148
  %v219 = vpack.c.b16 %v151, %v149
  %v220 = vpack.c.b16 %v154, %v152
  %v221 = vpack.c.b16 %v155, %v153
  %v222 = vpack.c.b16 %v158, %v156
  %v223 = vpack.c.b16 %v159, %v157
  %v224 = vpack.c.b16 %v162, %v160
  %v225 = vpack.c.b16 %v163, %v161
  %v226 = vpack.c.b16 %v166, %v164
  %v227 = vpack.c.b16 %v167, %v165
  %v228 = vpack.c.b16 %v170, %v168
  %v229 = vpack.c.b16 %v171, %v169
  %v230 = vpack.c.b16 %v174, %v172
  %v231 = vpack.c.b16 %v175, %v173
  %v232 = vpack.c.b16 %v178, %v176
  %v233 = vpack.c.b16 %v179, %v177
  %v234 = vpack.c.b16 %v182, %v180
  %v235 = vpack.c.b16 %v183, %v181
  %v236 = vpack.c.b16 %v186, %v184
  %v237 = vpack.c.b16 %v187, %v185
  %v238 = vpack.c.b16 %v190, %v188
  %v239 = vpack.c.b16 %v191, %v189
  %v240 = vpack.c.b16 %v194, %v192
  %v241 = vpack.c.b16 %v195, %v193
  %v242 = vpack.c.b16 %v198, %v196
  %v243 = vpack.c.b16 %v199, %v197
  %v244 = vpack.c.b16 %v202, %v200
  %v245 = vpack.c.b16 %v203, %v201
  %v246 = vpack.c.b16 %v206, %v204
  %v247 = vpack.c.b16 %v207, %v205
  %v248 = vpack.c.b16 %v210, %v208
  %v249 = vpack.c.b16 %v211, %v209
  %vm286 = vcmask 359424
  %v288 = vsel %vm286, %v47, 0
  %vm290 = vcmask 1045504
  %v292 = vsel %vm290, %v248, 0
  %v295 = vsel %vm290, %v249, 0
  %297 = vmatprep.subr.bf16.mxu0 %v213
  %298 = vmatpush1.bf16.msra.mxu0 %v212
  %299 = vmatprep.subr.bf16.mxu0 %v215
  %300 = vmatpush1.bf16.msra.mxu0 %v214
  %301 = vmatprep.subr.bf16.mxu0 %v217
  %302 = vmatpush1.bf16.msra.mxu0 %v216
  %303 = vmatprep.subr.bf16.mxu0 %v219
  %304 = vmatpush1.bf16.msra.mxu0 %v218
  %305 = vmatprep.subr.bf16.mxu0 %v221
  %306 = vmatpush1.bf16.msra.mxu0 %v220
  %307 = vmatprep.subr.bf16.mxu0 %v223
  %308 = vmatpush1.bf16.msra.mxu0 %v222
  %309 = vmatprep.subr.bf16.mxu0 %v225
  %310 = vmatpush1.bf16.msra.mxu0 %v224
  %311 = vmatprep.subr.bf16.mxu0 %v227
  %312 = vmatpush1.bf16.msra.mxu0 %v226
  %313 = vmatprep.subr.bf16.mxu0 %v229
  %314 = vmatpush1.bf16.msra.mxu0 %v228
  %315 = vmatprep.subr.bf16.mxu0 %v231
  %316 = vmatpush1.bf16.msra.mxu0 %v230
  %317 = vmatprep.subr.bf16.mxu0 %v233
  %318 = vmatpush1.bf16.msra.mxu0 %v232
  %319 = vmatprep.subr.bf16.mxu0 %v235
  %320 = vmatpush1.bf16.msra.mxu0 %v234
  %321 = vmatprep.subr.bf16.mxu0 %v237
  %322 = vmatpush1.bf16.msra.mxu0 %v236
  %323 = vmatprep.subr.bf16.mxu0 %v239
  %324 = vmatpush1.bf16.msra.mxu0 %v238
  %325 = vmatprep.subr.bf16.mxu0 %v241
  %326 = vmatpush1.bf16.msra.mxu0 %v240
  %327 = vmatprep.subr.bf16.mxu0 %v243
  %328 = vmatpush1.bf16.msra.mxu0 %v242
  %329 = vmatprep.mubr.bf16.mxu0 %v46
  %330 = vmatmul.mubr.bf16.gmra.mrb[0].mxu0 %v45
  %v331 = vpop.f32.mrb[0].mxu0
  %v332 = vadd.f32 %v91, %v331
  %v333 = vpop.f32.mrb[0].mxu0
  %v334 = vadd.f32 %v95, %v333
  %v335 = vpop.f32.mrb[0].mxu0
  %v336 = vadd.f32 %v91, %v335
  %v337 = vpop.f32.mrb[0].mxu0
  %v338 = vadd.f32 %v95, %v337
  %339 = vdwg.mxu0
  %340 = vmatprep.subr.bf16.mxu0 %v245
  %341 = vmatpush1.bf16.msra.mxu0 %v244
  %342 = vmatprep.subr.bf16.mxu0 %v247
  %343 = vmatpush1.bf16.msra.mxu0 %v246
  %344 = vmatprep.subr.bf16.mxu0 %v295
  %345 = vmatpush1.bf16.msra.mxu0 %v292
  %346 = vmatprep.subr.bf16.mxu0 0
  %347 = vmatpush1.bf16.msra.mxu0 0
  %348 = vmatprep.subr.bf16.mxu0 0
  %349 = vmatpush1.bf16.msra.mxu0 0
  %350 = vmatprep.subr.bf16.mxu0 0
  %351 = vmatpush1.bf16.msra.mxu0 0
  %352 = vmatprep.subr.bf16.mxu0 0
  %353 = vmatpush1.bf16.msra.mxu0 0
  %354 = vmatprep.subr.bf16.mxu0 0
  %355 = vmatpush1.bf16.msra.mxu0 0
  %356 = vmatprep.subr.bf16.mxu0 0
  %357 = vmatpush1.bf16.msra.mxu0 0
  %358 = vmatprep.subr.bf16.mxu0 0
  %359 = vmatpush1.bf16.msra.mxu0 0
  %360 = vmatprep.subr.bf16.mxu0 0
  %361 = vmatpush1.bf16.msra.mxu0 0
  %362 = vmatprep.subr.bf16.mxu0 0
  %363 = vmatpush1.bf16.msra.mxu0 0
  %364 = vmatprep.subr.bf16.mxu0 0
  %365 = vmatpush1.bf16.msra.mxu0 0
  %366 = vmatprep.subr.bf16.mxu0 0
  %367 = vmatpush1.bf16.msra.mxu0 0
  %368 = vmatprep.subr.bf16.mxu0 0
  %369 = vmatpush1.bf16.msra.mxu0 0
  %370 = vmatprep.subr.bf16.mxu0 0
  %371 = vmatpush1.bf16.msra.mxu0 0
  %372 = vmatprep.mubr.bf16.mxu0 0
  %373 = vmatmul.mubr.bf16.gmra.mrb[0].mxu0 %v288
  %v374 = vpop.f32.mrb[0].mxu0
  %v375 = vadd.f32 %v332, %v374
  %v376 = vpop.f32.mrb[0].mxu0
  %v377 = vadd.f32 %v334, %v376
  %v378 = vpop.f32.mrb[0].mxu0
  %v379 = vadd.f32 %v336, %v378
  %v380 = vpop.f32.mrb[0].mxu0
  %v381 = vadd.f32 %v338, %v380
  %382 = vdwg.mxu0
  %v383 = vmax.f32 %v375, 0.0
  %v384 = vmax.f32 %v377, 0.0
  %v385 = vmax.f32 %v379, 0.0
  %v386 = vmax.f32 %v381, 0.0
  %v387 = vpack.c.bf16 %v385, %v383
  %v388 = vpack.c.bf16 %v386, %v384
  %v389 = vld [vmem:[%s5] sm:$0xf]
  %v390 = vld [vmem:[%s5 + $0x4] sm:$0xf]
  %v391 = vld [vmem:[%s5 + $0x8] sm:$0xf]
  %v392 = vld [vmem:[%s5 + $0xc] sm:$0xf]
  %v393 = vld [vmem:[%s5 + $0x10] sm:$0xf]
  %v394 = vld [vmem:[%s5 + $0x14] sm:$0xf]
  %v395 = vld [vmem:[%s5 + $0x18] sm:$0xf]
  %v396 = vld [vmem:[%s5 + $0x1c] sm:$0xf]
  %v397 = vld [vmem:[%s5 + $0x20] sm:$0xf]
  %v398 = vld [vmem:[%s5 + $0x24] sm:$0xf]
  %v399 = vld [vmem:[%s5 + $0x28] sm:$0xf]
  %v400 = vld [vmem:[%s5 + $0x2c] sm:$0xf]
  %v401 = vld [vmem:[%s5 + $0x30] sm:$0xf]
  %v402 = vld [vmem:[%s5 + $0x34] sm:$0xf]
  %v403 = vld [vmem:[%s5 + $0x38] sm:$0xf]
  %v404 = vld [vmem:[%s5 + $0x3c] sm:$0xf]
  %v405 = vld [vmem:[%s5 + $0x40] sm:$0xf]
  %v406 = vld [vmem:[%s5 + $0x44] sm:$0xf]
  %v407 = vld [vmem:[%s5 + $0x48] sm:$0xf]
  %v408 = vld [vmem:[%s5 + $0x4c] sm:$0xf]
  %v409 = vld [vmem:[%s5 + $0x50] sm:$0xf]
  %v410 = vld [vmem:[%s1] sm:$0xff]
  %v411 = vld [vmem:[%s1 + $0x8] sm:$0xff]
  %v412 = vpack.c.bf16 %v411, %v410
  %v413 = vld [vmem:[%s6] sm:$0xf]
  %v414 = vld [vmem:[%s6 + $0x4] sm:$0xf]
  %v415 = vld [vmem:[%s6 + $0x8] sm:$0xf]
  %v416 = vld [vmem:[%s6 + $0xc] sm:$0xf]
  %v417 = vld [vmem:[%s6 + $0x10] sm:$0xf]
  %v418 = vld [vmem:[%s6 + $0x14] sm:$0xf]
  %v419 = vld [vmem:[%s6 + $0x18] sm:$0x1]
  %v427 = vunpack.c.l.b16 %v413
  %v428 = vunpack.c.l.b16 %v414
  %v429 = vunpack.c.l.b16 %v415
  %v430 = vunpack.c.l.b16 %v416
  %v431 = vunpack.c.l.b16 %v417
  %v432 = vunpack.c.l.b16 %v418
  %v433 = vunpack.c.l.b16 %v419
  %v434 = vpack.c.b16 %v428, %v427
  %v435 = vpack.c.b16 %v430, %v429
  %v436 = vpack.c.b16 %v432, %v431
  %v437 = vpack.c.b16 %v433, %v433
  %vm441 = vcmask 408576
  %v443 = vsel %vm441, %v412, 0
  %vm445 = vcmask 1040384
  %v447 = vsel %vm445, %v437, 0
  %449 = vmatprep.subr.bf16.mxu0 0
  %450 = vmatpush1.bf16.msra.mxu0 %v434
  %451 = vmatprep.subr.bf16.mxu0 0
  %452 = vmatpush1.bf16.msra.mxu0 %v435
  %453 = vmatprep.subr.bf16.mxu0 0
  %454 = vmatpush1.bf16.msra.mxu0 %v436
  %455 = vmatprep.subr.bf16.mxu0 0
  %456 = vmatpush1.bf16.msra.mxu0 %v447
  %457 = vmatprep.subr.bf16.mxu0 0
  %458 = vmatpush1.bf16.msra.mxu0 0
  %459 = vmatprep.subr.bf16.mxu0 0
  %460 = vmatpush1.bf16.msra.mxu0 0
  %461 = vmatprep.subr.bf16.mxu0 0
  %462 = vmatpush1.bf16.msra.mxu0 0
  %463 = vmatprep.subr.bf16.mxu0 0
  %464 = vmatpush1.bf16.msra.mxu0 0
  %465 = vmatprep.subr.bf16.mxu0 0
  %466 = vmatpush1.bf16.msra.mxu0 0
  %467 = vmatprep.subr.bf16.mxu0 0
  %468 = vmatpush1.bf16.msra.mxu0 0
  %469 = vmatprep.subr.bf16.mxu0 0
  %470 = vmatpush1.bf16.msra.mxu0 0
  %471 = vmatprep.subr.bf16.mxu0 0
  %472 = vmatpush1.bf16.msra.mxu0 0
  %473 = vmatprep.subr.bf16.mxu0 0
  %474 = vmatpush1.bf16.msra.mxu0 0
  %475 = vmatprep.subr.bf16.mxu0 0
  %476 = vmatpush1.bf16.msra.mxu0 0
  %477 = vmatprep.subr.bf16.mxu0 0
  %478 = vmatpush1.bf16.msra.mxu0 0
  %479 = vmatprep.subr.bf16.mxu0 0
  %480 = vmatpush1.bf16.msra.mxu0 0
  %481 = vmatprep.mubr.bf16.mxu0 0
  %482 = vmatmul.mubr.bf16.gmra.mrb[0].mxu0 %v443
  %v483 = vpop.f32.mrb[0].mxu0
  %v484 = vadd.f32 0.0, %v483
  %v485 = vpop.f32.mrb[0].mxu0
  %v486 = vpop.f32.mrb[0].mxu0
  %v487 = vadd.f32 0.0, %v486
  %v488 = vpop.f32.mrb[0].mxu0
  %489 = vdwg.mxu0
  %v511 = vunpack.c.l.b16 %v389
  %v512 = vunpack.c.l.b16 %v390
  %v513 = vunpack.c.l.b16 %v391
  %v514 = vunpack.c.l.b16 %v392
  %v515 = vunpack.c.l.b16 %v393
  %v516 = vunpack.c.l.b16 %v394
  %v517 = vunpack.c.l.b16 %v395
  %v518 = vunpack.c.l.b16 %v396
  %v519 = vunpack.c.l.b16 %v397
  %v520 = vunpack.c.l.b16 %v398
  %v521 = vunpack.c.l.b16 %v399
  %v522 = vunpack.c.l.b16 %v400
  %v523 = vunpack.c.l.b16 %v401
  %v524 = vunpack.c.l.b16 %v402
  %v525 = vunpack.c.l.b16 %v403
  %v526 = vunpack.c.l.b16 %v404
  %v527 = vunpack.c.l.b16 %v405
  %v528 = vunpack.c.l.b16 %v406
  %v529 = vunpack.c.l.b16 %v407
  %v530 = vunpack.c.l.b16 %v408
  %v531 = vunpack.c.l.b16 %v409
  %v532 = vpack.c.b16 %v512, %v511
  %v533 = vpack.c.b16 %v514, %v513
  %v534 = vpack.c.b16 %v516, %v515
  %v535 = vpack.c.b16 %v518, %v517
  %v536 = vpack.c.b16 %v520, %v519
  %v537 = vpack.c.b16 %v522, %v521
  %v538 = vpack.c.b16 %v524, %v523
  %v539 = vpack.c.b16 %v526, %v525
  %v540 = vpack.c.b16 %v528, %v527
  %v541 = vpack.c.b16 %v530, %v529
  %v542 = vpack.c.b16 %v531, %v531
  %vm553 = vcmask 326656
  %v555 = vsel %vm553, %v388, 0
  %vm557 = vcmask 1043456
  %v559 = vsel %vm557, %v542, 0
  %561 = vmatprep.subr.bf16.mxu0 0
  %562 = vmatpush1.bf16.msra.mxu0 %v532
  %563 = vmatprep.subr.bf16.mxu0 0
  %564 = vmatpush1.bf16.msra.mxu0 %v533
  %565 = vmatprep.subr.bf16.mxu0 0
  %566 = vmatpush1.bf16.msra.mxu0 %v534
  %567 = vmatprep.subr.bf16.mxu0 0
  %568 = vmatpush1.bf16.msra.mxu0 %v535
  %569 = vmatprep.subr.bf16.mxu0 0
  %570 = vmatpush1.bf16.msra.mxu0 %v536
  %571 = vmatprep.subr.bf16.mxu0 0
  %572 = vmatpush1.bf16.msra.mxu0 %v537
  %573 = vmatprep.subr.bf16.mxu0 0
  %574 = vmatpush1.bf16.msra.mxu0 %v538
  %575 = vmatprep.subr.bf16.mxu0 0
  %576 = vmatpush1.bf16.msra.mxu0 %v539
  %577 = vmatprep.subr.bf16.mxu0 0
  %578 = vmatpush1.bf16.msra.mxu0 %v540
  %579 = vmatprep.subr.bf16.mxu0 0
  %580 = vmatpush1.bf16.msra.mxu0 %v541
  %581 = vmatprep.subr.bf16.mxu0 0
  %582 = vmatpush1.bf16.msra.mxu0 %v559
  %583 = vmatprep.subr.bf16.mxu0 0
  %584 = vmatpush1.bf16.msra.mxu0 0
  %585 = vmatprep.subr.bf16.mxu0 0
  %586 = vmatpush1.bf16.msra.mxu0 0
  %587 = vmatprep.subr.bf16.mxu0 0
  %588 = vmatpush1.bf16.msra.mxu0 0
  %589 = vmatprep.subr.bf16.mxu0 0
  %590 = vmatpush1.bf16.msra.mxu0 0
  %591 = vmatprep.subr.bf16.mxu0 0
  %592 = vmatpush1.bf16.msra.mxu0 0
  %593 = vmatprep.mubr.bf16.mxu0 %v555
  %594 = vmatmul.mubr.bf16.gmra.mrb[0].mxu0 %v387
  %v595 = vpop.f32.mrb[0].mxu0
  %v596 = vadd.f32 %v484, %v595
  %v597 = vpop.f32.mrb[0].mxu0
  %v598 = vpop.f32.mrb[0].mxu0
  %v599 = vadd.f32 %v487, %v598
  %v600 = vpop.f32.mrb[0].mxu0
  %601 = vdwg.mxu0
  %v602 = vld [vmem:[%s2] sm:$0xff]
  %v603 = vld [vmem:[%s2 + $0x8] sm:$0xff]
  %v604 = vpack.c.bf16 %v603, %v602
  %v605 = vld [vmem:[%s7] sm:$0xf]
  %v606 = vld [vmem:[%s7 + $0x4] sm:$0xf]
  %v607 = vld [vmem:[%s7 + $0x8] sm:$0xf]
  %v608 = vld [vmem:[%s7 + $0xc] sm:$0x7]
  %v613 = vunpack.c.l.b16 %v605
  %v614 = vunpack.c.l.b16 %v606
  %v615 = vunpack.c.l.b16 %v607
  %v616 = vunpack.c.l.b16 %v608
  %v617 = vpack.c.b16 %v614, %v613
  %v618 = vpack.c.b16 %v616, %v615
  %vm620 = vcmask 244736
  %v622 = vsel %vm620, %v604, 0
  %vm624 = vcmask 1046528
  %v626 = vsel %vm624, %v618, 0
  %628 = vmatprep.subr.bf16.mxu0 0
  %629 = vmatpush1.bf16.msra.mxu0 %v617
  %630 = vmatprep.subr.bf16.mxu0 0
  %631 = vmatpush1.bf16.msra.mxu0 %v626
  %632 = vmatprep.subr.bf16.mxu0 0
  %633 = vmatpush1.bf16.msra.mxu0 0
  %634 = vmatprep.subr.bf16.mxu0 0
  %635 = vmatpush1.bf16.msra.mxu0 0
  %636 = vmatprep.subr.bf16.mxu0 0
  %637 = vmatpush1.bf16.msra.mxu0 0
  %638 = vmatprep.subr.bf16.mxu0 0
  %639 = vmatpush1.bf16.msra.mxu0 0
  %640 = vmatprep.subr.bf16.mxu0 0
  %641 = vmatpush1.bf16.msra.mxu0 0
  %642 = vmatprep.subr.bf16.mxu0 0
  %643 = vmatpush1.bf16.msra.mxu0 0
  %644 = vmatprep.subr.bf16.mxu0 0
  %645 = vmatpush1.bf16.msra.mxu0 0
  %646 = vmatprep.subr.bf16.mxu0 0
  %647 = vmatpush1.bf16.msra.mxu0 0
  %648 = vmatprep.subr.bf16.mxu0 0
  %649 = vmatpush1.bf16.msra.mxu0 0
  %650 = vmatprep.subr.bf16.mxu0 0
  %651 = vmatpush1.bf16.msra.mxu0 0
  %652 = vmatprep.subr.bf16.mxu0 0
  %653 = vmatpush1.bf16.msra.mxu0 0
  %654 = vmatprep.subr.bf16.mxu0 0
  %655 = vmatpush1.bf16.msra.mxu0 0
  %656 = vmatprep.subr.bf16.mxu0 0
  %657 = vmatpush1.bf16.msra.mxu0 0
  %658 = vmatprep.subr.bf16.mxu0 0
  %659 = vmatpush1.bf16.msra.mxu0 0
  %660 = vmatprep.mubr.bf16.mxu0 0
  %661 = vmatmul.mubr.bf16.gmra.mrb[0].mxu0 %v622
  %v662 = vpop.f32.mrb[0].mxu0
  %v663 = vadd.f32 0.0, %v662
  %v664 = vpop.f32.mrb[0].mxu0
  %v665 = vpop.f32.mrb[0].mxu0
  %v666 = vadd.f32 0.0, %v665
  %v667 = vpop.f32.mrb[0].mxu0
  %668 = vdwg.mxu0
  %v669 = vadd.f32 %v596, %v663
  %v670 = vadd.f32 %v599, %v666
  %v671 = vld [vmem:[%s8] sm:$0x1]
  %v673 = vlaneseq
  %v674 = vshrl.u32 %v673, 7
  %v675 = vsub.s32 0, %v674
  %v676 = vrot.slane %v671, %v675
  %v678 = vadd.f32 %v669, %v676
  %v679 = vadd.f32 %v670, %v676
  %v680 = vmax.f32 %v678, 0.0
  %v681 = vmax.f32 %v679, 0.0
  %v682 = vpack.c.bf16 %v681, %v680
  %v683 = vld [vmem:[%s9] sm:$0xf]
  %v684 = vld [vmem:[%s9 + $0x4] sm:$0xf]
  %v685 = vld [vmem:[%s9 + $0x8] sm:$0xf]
  %v686 = vld [vmem:[%s9 + $0xc] sm:$0xf]
  %v687 = vld [vmem:[%s9 + $0x10] sm:$0xf]
  %v688 = vld [vmem:[%s9 + $0x14] sm:$0xf]
  %v689 = vld [vmem:[%s9 + $0x18] sm:$0xf]
  %v690 = vld [vmem:[%s9 + $0x1c] sm:$0xf]
  %v691 = vld [vmem:[%s9 + $0x20] sm:$0xf]
  %v692 = vld [vmem:[%s9 + $0x24] sm:$0xf]
  %v693 = vld [vmem:[%s10] sm:$0x1]
  %v695 = vlaneseq
  %v696 = vshrl.u32 %v695, 7
  %v697 = vsub.s32 0, %v696
  %v698 = vrot.slane %v693, %v697
  %v710 = vunpack.c.l.b16 %v683
  %v711 = vunpack.c.l.b16 %v684
  %v712 = vunpack.c.l.b16 %v685
  %v713 = vunpack.c.l.b16 %v686
  %v714 = vunpack.c.l.b16 %v687
  %v715 = vunpack.c.l.b16 %v688
  %v716 = vunpack.c.l.b16 %v689
  %v717 = vunpack.c.l.b16 %v690
  %v718 = vunpack.c.l.b16 %v691
  %v719 = vunpack.c.l.b16 %v692
  %v720 = vpack.c.b16 %v711, %v710
  %v721 = vpack.c.b16 %v713, %v712
  %v722 = vpack.c.b16 %v715, %v714
  %v723 = vpack.c.b16 %v717, %v716
  %v724 = vpack.c.b16 %v719, %v718
  %vm730 = vcmask 654336
  %v732 = vsel %vm730, %v682, 0
  %734 = vmatprep.subr.bf16.mxu0 0
  %735 = vmatpush1.bf16.msra.mxu0 %v720
  %736 = vmatprep.subr.bf16.mxu0 0
  %737 = vmatpush1.bf16.msra.mxu0 %v721
  %738 = vmatprep.subr.bf16.mxu0 0
  %739 = vmatpush1.bf16.msra.mxu0 %v722
  %740 = vmatprep.subr.bf16.mxu0 0
  %741 = vmatpush1.bf16.msra.mxu0 %v723
  %742 = vmatprep.subr.bf16.mxu0 0
  %743 = vmatpush1.bf16.msra.mxu0 %v724
  %744 = vmatprep.subr.bf16.mxu0 0
  %745 = vmatpush1.bf16.msra.mxu0 0
  %746 = vmatprep.subr.bf16.mxu0 0
  %747 = vmatpush1.bf16.msra.mxu0 0
  %748 = vmatprep.subr.bf16.mxu0 0
  %749 = vmatpush1.bf16.msra.mxu0 0
  %750 = vmatprep.subr.bf16.mxu0 0
  %751 = vmatpush1.bf16.msra.mxu0 0
  %752 = vmatprep.subr.bf16.mxu0 0
  %753 = vmatpush1.bf16.msra.mxu0 0
  %754 = vmatprep.subr.bf16.mxu0 0
  %755 = vmatpush1.bf16.msra.mxu0 0
  %756 = vmatprep.subr.bf16.mxu0 0
  %757 = vmatpush1.bf16.msra.mxu0 0
  %758 = vmatprep.subr.bf16.mxu0 0
  %759 = vmatpush1.bf16.msra.mxu0 0
  %760 = vmatprep.subr.bf16.mxu0 0
  %761 = vmatpush1.bf16.msra.mxu0 0
  %762 = vmatprep.subr.bf16.mxu0 0
  %763 = vmatpush1.bf16.msra.mxu0 0
  %764 = vmatprep.subr.bf16.mxu0 0
  %765 = vmatpush1.bf16.msra.mxu0 0
  %766 = vmatprep.mubr.bf16.mxu0 0
  %767 = vmatmul.mubr.bf16.gmra.mrb[0].mxu0 %v732
  %v768 = vpop.f32.mrb[0].mxu0
  %v769 = vadd.f32 %v698, %v768
  %v770 = vpop.f32.mrb[0].mxu0
  %v771 = vpop.f32.mrb[0].mxu0
  %v772 = vadd.f32 %v698, %v771
  %v773 = vpop.f32.mrb[0].mxu0
  %774 = vdwg.mxu0
  %v775 = vpack.c.bf16 %v772, %v769
  %v777 = vunpack.c.l.b16 %v775
  %v778 = vunpack.c.h.b16 %v775
  %v779 = vpack.c.b16 %v777, %v777
  %v780 = vpack.c.b16 %v778, %v778
  %783 = vst [vmem:[%s11] sm:$0xf] %v779
  %784 = vst [vmem:[%s11 + $0x4] sm:$0xf] %v780
  // Predicated region
  $region46: #{product_nn_forward.1} parent=0 // pred_check
    _
  $region47: #{product_nn_forward.1} parent=0 // pred_check_branch
    %786 = sbr.rel (0) target = $region49
  $region48: #{product_nn_forward.1} parent=0 // pred_region
    _
  $region49: #{product_nn_forward.1} parent=0 // pred_fallthru
    _
  // Predicated region
  $region50: #{product_nn_forward.1} parent=0 // pred_check
    _
  $region51: #{product_nn_forward.1} parent=0 // pred_check_branch
    %788 = sbr.rel (0) target = $region53
  $region52: #{product_nn_forward.1} parent=0 // pred_region
    _
  $region53: #{product_nn_forward.1} parent=0 // pred_fallthru
    _

</llo_original>
